<compile_context>
chip_gen: v6e
topology: v6e:2x2x1
jax: 0.10.0
libtpu: 0.0.40
codegen_flags: <defaults>
</compile_context>

<pallas_src>
import functools

import jax
import jax.numpy as jnp
import numpy as np
from jax import lax
from jax.experimental import pallas as pl
from jax.experimental.pallas import tpu as pltpu

_LANE = 128                 # TPU lane width; output projection padded to this
_UNROLL_MAX_LAYERS = 6      # static unroll threshold for the hidden-layer loop


def _softplus(v):
    # numerically stable softplus: max(v, 0) + log1p(exp(-|v|))
    return jnp.maximum(v, 0.0) + jnp.log1p(jnp.exp(-jnp.abs(v)))


def _pinn_mlp_kernel(x_ref, w_in_ref, b_in_ref, w_h_ref, b_h_ref,
                     w_out_ref, b_out_ref, out_ref, *, dot_dtype, unroll_layers):
    """Fused MLP forward for one batch tile.

    x_ref     : (Bt, D)        input tile (already in dot_dtype)
    w_in_ref  : (D, H)         in_layer weight (transposed, dot_dtype)
    b_in_ref  : (1, H)         in_layer bias (f32)
    w_h_ref   : (L, H, H)      hidden weights (transposed, stacked, dot_dtype)
    b_h_ref   : (L, 1, H)      hidden biases (f32)
    w_out_ref : (H, 128)       out_layer weight (transposed, zero-padded)
    b_out_ref : (1, 128)       out_layer bias (zero-padded, f32)
    out_ref   : (Bt, 128)      softplus(out); wrapper slices [:, :2]
    """
    f32 = jnp.float32

    h = (jnp.dot(x_ref[...], w_in_ref[...], preferred_element_type=f32)
         + b_in_ref[...])                                            # (Bt, H) f32

    n_layers = w_h_ref.shape[0]                                      # static

    def layer(l, h):
        h = jnp.tanh(h)                                              # full-width EUP tanh (f32)
        return (jnp.dot(h.astype(dot_dtype), w_h_ref[l],
                        preferred_element_type=f32) + b_h_ref[l])    # (Bt, H) f32

    if unroll_layers:
        for l in range(n_layers):                                    # static unroll (small L)
            h = layer(l, h)
    else:
        # bounded live ranges for deep nets; dynamic first-axis weight indexing
        h = lax.fori_loop(0, n_layers, layer, h, unroll=2)

    h = jnp.tanh(h)
    out = (jnp.dot(h.astype(dot_dtype), w_out_ref[...],
                   preferred_element_type=f32) + b_out_ref[...])     # (Bt, 128) f32

    out_ref[...] = _softplus(out)                                    # one lane-dense store


def prepare_params(params, *, use_bf16=False):
    """One-time parameter prep (hoisted out of the per-call hot path):
    transpose to row-major `x @ W` layouts, zero-pad the output projection to
    128 lanes, and optionally pre-cast weights to bf16 for the MXU."""
    dot_dtype = jnp.bfloat16 if use_bf16 else jnp.float32
    w_in, b_in = params["w_in"], params["b_in"]          # (H, D), (H,)
    w_hs, b_hs = params["w_hs"], params["b_hs"]          # (L, H, H), (L, H)
    w_out, b_out = params["w_out"], params["b_out"]      # (O, H), (O,)
    H = w_in.shape[0]
    L = w_hs.shape[0]
    O = w_out.shape[0]
    # TODO(synk): n_layers == 0 (net=None) configuration is not wired into the kernel.
    assert L >= 1
    assert O <= _LANE

    w_out_pad = jnp.zeros((H, _LANE), dot_dtype).at[:, :O].set(
        jnp.transpose(w_out).astype(dot_dtype))
    b_out_pad = jnp.zeros((1, _LANE), jnp.float32).at[:, :O].set(
        b_out.astype(jnp.float32))

    prepped = {
        "w_in": jnp.transpose(w_in).astype(dot_dtype),             # (D, H)
        "b_in": b_in.reshape(1, H).astype(jnp.float32),            # (1, H)
        "w_hs": jnp.transpose(w_hs, (0, 2, 1)).astype(dot_dtype),  # (L, H, H)
        "b_hs": b_hs.reshape(L, 1, H).astype(jnp.float32),         # (L, 1, H)
        "w_out": w_out_pad,                                        # (H, 128)
        "b_out": b_out_pad,                                        # (1, 128)
    }
    return prepped, O, dot_dtype


def pinn_mlp_forward(x, prepped, out_dim, dot_dtype, *, b_tile=None,
                     single_buffer_weights=False, vmem_limit_bytes=None):
    """x: (B, in_dim) float32.  Returns (I, R), each (B, 1) float32."""
    B, D = x.shape
    H = prepped["w_in"].shape[1]
    L = prepped["w_hs"].shape[0]

    # Batch tile selection: one grid step for small B, 256-row tiles otherwise.
    if b_tile is None:
        if B <= 256:
            b_tile = B
        else:
            b_tile = 256
            while b_tile >= 8 and B % b_tile:
                b_tile //= 2
            if b_tile < 8:
                b_tile = B
    assert b_tile == B or (b_tile % 8 == 0 and B % b_tile == 0), \
        "b_tile must equal B or be a multiple of 8 dividing B"
    steps = B // b_tile

    # Weights/biases are grid-invariant (constant index_maps). Optionally
    # single-buffer them for v7x-sized VMEM budgets at realistic H/L; this is
    # irrelevant (and skipped) when the grid has a single step.
    w_mode = {}
    if single_buffer_weights and steps > 1:
        w_mode = dict(pipeline_mode=pl.Buffered(1))

    kernel = functools.partial(
        _pinn_mlp_kernel,
        dot_dtype=dot_dtype,
        unroll_layers=(L <= _UNROLL_MAX_LAYERS),
    )

    out = pl.pallas_call(
        kernel,
        out_shape=jax.ShapeDtypeStruct((B, _LANE), jnp.float32),
        grid_spec=pltpu.PrefetchScalarGridSpec(
            num_scalar_prefetch=0,
            grid=(steps,),
            in_specs=[
                pl.BlockSpec((b_tile, D), lambda i: (i, 0)),
                pl.BlockSpec((D, H), lambda i: (0, 0), **w_mode),
                pl.BlockSpec((1, H), lambda i: (0, 0), **w_mode),
                pl.BlockSpec((L, H, H), lambda i: (0, 0, 0), **w_mode),
                pl.BlockSpec((L, 1, H), lambda i: (0, 0, 0), **w_mode),
                pl.BlockSpec((H, _LANE), lambda i: (0, 0), **w_mode),
                pl.BlockSpec((1, _LANE), lambda i: (0, 0), **w_mode),
            ],
            out_specs=pl.BlockSpec((b_tile, _LANE), lambda i: (i, 0)),
        ),
        compiler_params=pltpu.CompilerParams(
            dimension_semantics=("parallel",),
            vmem_limit_bytes=vmem_limit_bytes),
    )(x.astype(dot_dtype), prepped["w_in"], prepped["b_in"], prepped["w_hs"],
      prepped["b_hs"], prepped["w_out"], prepped["b_out"])

    I = out[:, 0:1]
    R = out[:, 1:2]
    return I, R


def pinn_mlp_reference(x, params):
    """Pure-JAX reference (same math as the PyTorch PINN_MLP forward)."""
    h = x @ params["w_in"].T + params["b_in"]
    for l in range(params["w_hs"].shape[0]):
        h = jnp.tanh(h)
        h = h @ params["w_hs"][l].T + params["b_hs"][l]
    h = jnp.tanh(h)
    out = h @ params["w_out"].T + params["b_out"]
    return jax.nn.softplus(out[:, 0:1]), jax.nn.softplus(out[:, 1:2])


def init_params(key, in_dim, out_dim, h_dim, n_layers):
    """Deterministic init mirroring nn.Linear parameter shapes/scales."""
    ks = jax.random.split(key, 6)
    u = lambda k, shape, s: jax.random.uniform(k, shape, jnp.float32, -s, s)
    k_in = 1.0 / np.sqrt(in_dim)
    k_h = 1.0 / np.sqrt(h_dim)
    return {
        "w_in": u(ks[0], (h_dim, in_dim), k_in),
        "b_in": u(ks[1], (h_dim,), k_in),
        "w_hs": u(ks[2], (n_layers, h_dim, h_dim), k_h),
        "b_hs": u(ks[3], (n_layers, h_dim), k_h),
        "w_out": u(ks[4], (out_dim, h_dim), k_h),
        "b_out": u(ks[5], (out_dim,), k_h),
    }


if __name__ == "__main__":
    B, in_dim, h_dim, out_dim = 16, 4, 128, 2

    key = jax.random.PRNGKey(0)
    kx, kp = jax.random.split(key)
    x = jax.random.normal(kx, (B, in_dim), jnp.float32)

    # 1) toy shape (n_layers=2), f32 path, single grid step (grid=(1,), b_tile=B)
    params = init_params(kp, in_dim, out_dim, h_dim, n_layers=2)
    prepped, O, dt = prepare_params(params, use_bf16=False)
    I, R = pinn_mlp_forward(x, prepped, O, dt)
    jax.block_until_ready((I, R))
    I_ref, R_ref = pinn_mlp_reference(x, params)
    np.testing.assert_allclose(np.asarray(I), np.asarray(I_ref), rtol=1e-5, atol=1e-5)
    np.testing.assert_allclose(np.asarray(R), np.asarray(R_ref), rtol=1e-5, atol=1e-5)

    # 2) bf16 MXU operands (production path on v6e/v7x), f32 accumulate/activations
    prepped_bf, O_bf, dt_bf = prepare_params(params, use_bf16=True)
    I_bf, R_bf = pinn_mlp_forward(x, prepped_bf, O_bf, dt_bf)
    jax.block_until_ready((I_bf, R_bf))
    np.testing.assert_allclose(np.asarray(I_bf), np.asarray(I_ref), rtol=2e-2, atol=2e-2)
    np.testing.assert_allclose(np.asarray(R_bf), np.asarray(R_ref), rtol=2e-2, atol=2e-2)

    # 3) deeper net exercises the fori_loop layer path (L > unroll threshold)
    params_deep = init_params(jax.random.PRNGKey(1), in_dim, out_dim, h_dim, n_layers=8)
    prepped_d, O_d, dt_d = prepare_params(params_deep, use_bf16=False)
    I_d, R_d = pinn_mlp_forward(x, prepped_d, O_d, dt_d)
    jax.block_until_ready((I_d, R_d))
    I_dr, R_dr = pinn_mlp_reference(x, params_deep)
    np.testing.assert_allclose(np.asarray(I_d), np.asarray(I_dr), rtol=1e-5, atol=1e-5)
    np.testing.assert_allclose(np.asarray(R_d), np.asarray(R_dr), rtol=1e-5, atol=1e-5)

    # 4) large-batch path: multi-step grid (grid=(2,), 256-row tiles), resident weights
    xb = jax.random.normal(jax.random.PRNGKey(2), (512, in_dim), jnp.float32)
    I_b, R_b = pinn_mlp_forward(xb, prepped, O, dt, b_tile=256)
    jax.block_until_ready((I_b, R_b))
    I_br, R_br = pinn_mlp_reference(xb, params)
    np.testing.assert_allclose(np.asarray(I_b), np.asarray(I_br), rtol=1e-5, atol=1e-5)
    np.testing.assert_allclose(np.asarray(R_b), np.asarray(R_br), rtol=1e-5, atol=1e-5)

    print("KERNEL_OK")
</pallas_src>

<mosaic_0001>
module attributes {stable_mosaic.version = 11 : i64} {
  func.func @_pinn_mlp_kernel(%arg0: i32, %arg1: memref<16x4xf32, #tpu.memory_space<vmem>>, %arg2: memref<4x128xf32, #tpu.memory_space<vmem>>, %arg3: memref<1x128xf32, #tpu.memory_space<vmem>>, %arg4: memref<2x128x128xf32, #tpu.memory_space<vmem>>, %arg5: memref<2x1x128xf32, #tpu.memory_space<vmem>>, %arg6: memref<128x128xf32, #tpu.memory_space<vmem>>, %arg7: memref<1x128xf32, #tpu.memory_space<vmem>>, %arg8: memref<16x128xf32, #tpu.memory_space<vmem>>) attributes {dimension_semantics = [#tpu.dimension_semantics<parallel>], iteration_bounds = array<i64: 1>, scalar_prefetch = 0 : i64, scratch_operands = 0 : i64, tpu.core_type = #tpu.core_type<tc>, window_params = [{transform_indices = @transform_0, window_bounds = array<i64: 16, 4>}, {pipeline_mode = #tpu.pipeline_mode<synchronous>, transform_indices = @transform_1, window_bounds = array<i64: 4, 128>}, {pipeline_mode = #tpu.pipeline_mode<synchronous>, transform_indices = @transform_2, window_bounds = array<i64: 1, 128>}, {pipeline_mode = #tpu.pipeline_mode<synchronous>, transform_indices = @transform_3, window_bounds = array<i64: 2, 128, 128>}, {pipeline_mode = #tpu.pipeline_mode<synchronous>, transform_indices = @transform_4, window_bounds = array<i64: 2, 1, 128>}, {pipeline_mode = #tpu.pipeline_mode<synchronous>, transform_indices = @transform_5, window_bounds = array<i64: 128, 128>}, {pipeline_mode = #tpu.pipeline_mode<synchronous>, transform_indices = @transform_6, window_bounds = array<i64: 1, 128>}, {transform_indices = @transform_7, window_bounds = array<i64: 16, 128>}]} {
    %c0 = arith.constant 0 : index
    %c0_0 = arith.constant 0 : index
    %0 = vector.load %arg1[%c0, %c0_0] : memref<16x4xf32, #tpu.memory_space<vmem>>, vector<16x4xf32>
    %c0_1 = arith.constant 0 : index
    %c0_2 = arith.constant 0 : index
    %1 = vector.load %arg2[%c0_1, %c0_2] : memref<4x128xf32, #tpu.memory_space<vmem>>, vector<4x128xf32>
    %cst = arith.constant dense<0.000000e+00> : vector<16x128xf32>
    %2 = tpu.matmul %0, %1, %cst {dimension_numbers = #tpu.dot_dimension_numbers<[1], [0], [0], [1], [0, 0, 1, 1], [], []>} : vector<16x4xf32>, vector<4x128xf32>, vector<16x128xf32> -> vector<16x128xf32>
    %c0_3 = arith.constant 0 : index
    %c0_4 = arith.constant 0 : index
    %3 = vector.load %arg3[%c0_3, %c0_4] : memref<1x128xf32, #tpu.memory_space<vmem>>, vector<1x128xf32>
    %4 = vector.broadcast %3 : vector<1x128xf32> to vector<16x128xf32>
    %5 = arith.addf %2, %4 : vector<16x128xf32>
    %6 = math.tanh %5 : vector<16x128xf32>
    %c0_5 = arith.constant 0 : index
    %c0_6 = arith.constant 0 : index
    %c0_7 = arith.constant 0 : index
    %7 = vector.load %arg4[%c0_5, %c0_6, %c0_7] : memref<2x128x128xf32, #tpu.memory_space<vmem>>, vector<1x128x128xf32>
    %8 = vector.shape_cast %7 : vector<1x128x128xf32> to vector<128x128xf32>
    %cst_8 = arith.constant dense<0.000000e+00> : vector<16x128xf32>
    %9 = tpu.matmul %6, %8, %cst_8 {dimension_numbers = #tpu.dot_dimension_numbers<[1], [0], [0], [1], [0, 0, 1, 1], [], []>} : vector<16x128xf32>, vector<128x128xf32>, vector<16x128xf32> -> vector<16x128xf32>
    %c0_9 = arith.constant 0 : index
    %c0_10 = arith.constant 0 : index
    %c0_11 = arith.constant 0 : index
    %10 = vector.load %arg5[%c0_9, %c0_10, %c0_11] : memref<2x1x128xf32, #tpu.memory_space<vmem>>, vector<1x1x128xf32>
    %11 = vector.shape_cast %10 : vector<1x1x128xf32> to vector<1x128xf32>
    %12 = vector.broadcast %11 : vector<1x128xf32> to vector<16x128xf32>
    %13 = arith.addf %9, %12 : vector<16x128xf32>
    %14 = math.tanh %13 : vector<16x128xf32>
    %c1 = arith.constant 1 : index
    %c0_12 = arith.constant 0 : index
    %c0_13 = arith.constant 0 : index
    %15 = vector.load %arg4[%c1, %c0_12, %c0_13] : memref<2x128x128xf32, #tpu.memory_space<vmem>>, vector<1x128x128xf32>
    %16 = vector.shape_cast %15 : vector<1x128x128xf32> to vector<128x128xf32>
    %cst_14 = arith.constant dense<0.000000e+00> : vector<16x128xf32>
    %17 = tpu.matmul %14, %16, %cst_14 {dimension_numbers = #tpu.dot_dimension_numbers<[1], [0], [0], [1], [0, 0, 1, 1], [], []>} : vector<16x128xf32>, vector<128x128xf32>, vector<16x128xf32> -> vector<16x128xf32>
    %c1_15 = arith.constant 1 : index
    %c0_16 = arith.constant 0 : index
    %c0_17 = arith.constant 0 : index
    %18 = vector.load %arg5[%c1_15, %c0_16, %c0_17] : memref<2x1x128xf32, #tpu.memory_space<vmem>>, vector<1x1x128xf32>
    %19 = vector.shape_cast %18 : vector<1x1x128xf32> to vector<1x128xf32>
    %20 = vector.broadcast %19 : vector<1x128xf32> to vector<16x128xf32>
    %21 = arith.addf %17, %20 : vector<16x128xf32>
    %22 = math.tanh %21 : vector<16x128xf32>
    %c0_18 = arith.constant 0 : index
    %c0_19 = arith.constant 0 : index
    %23 = vector.load %arg6[%c0_18, %c0_19] : memref<128x128xf32, #tpu.memory_space<vmem>>, vector<128x128xf32>
    %cst_20 = arith.constant dense<0.000000e+00> : vector<16x128xf32>
    %24 = tpu.matmul %22, %23, %cst_20 {dimension_numbers = #tpu.dot_dimension_numbers<[1], [0], [0], [1], [0, 0, 1, 1], [], []>} : vector<16x128xf32>, vector<128x128xf32>, vector<16x128xf32> -> vector<16x128xf32>
    %c0_21 = arith.constant 0 : index
    %c0_22 = arith.constant 0 : index
    %25 = vector.load %arg7[%c0_21, %c0_22] : memref<1x128xf32, #tpu.memory_space<vmem>>, vector<1x128xf32>
    %26 = vector.broadcast %25 : vector<1x128xf32> to vector<16x128xf32>
    %27 = arith.addf %24, %26 : vector<16x128xf32>
    %cst_23 = arith.constant 0.000000e+00 : f32
    %28 = vector.broadcast %cst_23 : f32 to vector<16x128xf32>
    %29 = arith.maximumf %27, %28 : vector<16x128xf32>
    %30 = math.absf %27 : vector<16x128xf32>
    %cst_24 = arith.constant 0.000000e+00 : f32
    %31 = vector.broadcast %cst_24 : f32 to vector<16x128xf32>
    %32 = arith.subf %31, %30 : vector<16x128xf32>
    %33 = math.exp %32 : vector<16x128xf32>
    %34 = math.log1p %33 : vector<16x128xf32>
    %35 = arith.addf %29, %34 : vector<16x128xf32>
    %c0_25 = arith.constant 0 : index
    %c0_26 = arith.constant 0 : index
    %36 = vector.load %arg8[%c0_25, %c0_26] : memref<16x128xf32, #tpu.memory_space<vmem>>, vector<16x128xf32>
    tpu.vector_store %arg8[%c0_25, %c0_26], %35 {strides = array<i32>} : memref<16x128xf32, #tpu.memory_space<vmem>>, vector<16x128xf32>,
    return
  }
  func.func @transform_0(%arg0: i32) -> (i32, i32) {
    %c0_i32 = arith.constant 0 : i32
    %c0_i32_0 = arith.constant 0 : i32
    return %arg0, %c0_i32 : i32, i32
  }
  func.func @transform_1(%arg0: i32) -> (i32, i32) {
    %c0_i32 = arith.constant 0 : i32
    %c0_i32_0 = arith.constant 0 : i32
    %c0_i32_1 = arith.constant 0 : i32
    return %c0_i32, %c0_i32_0 : i32, i32
  }
  func.func @transform_2(%arg0: i32) -> (i32, i32) {
    %c0_i32 = arith.constant 0 : i32
    %c0_i32_0 = arith.constant 0 : i32
    %c0_i32_1 = arith.constant 0 : i32
    return %c0_i32, %c0_i32_0 : i32, i32
  }
  func.func @transform_3(%arg0: i32) -> (i32, i32, i32) {
    %c0_i32 = arith.constant 0 : i32
    %c0_i32_0 = arith.constant 0 : i32
    %c0_i32_1 = arith.constant 0 : i32
    %c0_i32_2 = arith.constant 0 : i32
    return %c0_i32, %c0_i32_0, %c0_i32_1 : i32, i32, i32
  }
  func.func @transform_4(%arg0: i32) -> (i32, i32, i32) {
    %c0_i32 = arith.constant 0 : i32
    %c0_i32_0 = arith.constant 0 : i32
    %c0_i32_1 = arith.constant 0 : i32
    %c0_i32_2 = arith.constant 0 : i32
    return %c0_i32, %c0_i32_0, %c0_i32_1 : i32, i32, i32
  }
  func.func @transform_5(%arg0: i32) -> (i32, i32) {
    %c0_i32 = arith.constant 0 : i32
    %c0_i32_0 = arith.constant 0 : i32
    %c0_i32_1 = arith.constant 0 : i32
    return %c0_i32, %c0_i32_0 : i32, i32
  }
  func.func @transform_6(%arg0: i32) -> (i32, i32) {
    %c0_i32 = arith.constant 0 : i32
    %c0_i32_0 = arith.constant 0 : i32
    %c0_i32_1 = arith.constant 0 : i32
    return %c0_i32, %c0_i32_0 : i32, i32
  }
  func.func @transform_7(%arg0: i32) -> (i32, i32) {
    %c0_i32 = arith.constant 0 : i32
    %c0_i32_0 = arith.constant 0 : i32
    return %arg0, %c0_i32 : i32, i32
  }
}

</mosaic_0001>

<llo_original>
// kernel: tpu_custom_call.1
$region0: #{tpu_custom_call.1}
  #allocation0 [shape = 'u32[]', space=smem, size = 0x4, offset = 0x4, fixed_abs, tag = 'smem constant byte address 0x4 - core index']
  #allocation1 [shape = 'u32[144,128]{1,0:T(1,128)}', space=vmem, size = 0x12000, scoped, tag = 'internal scratch']
  %s0 = inlined_call_operand.vmem [shape: f32[16,4], index: 0, kind: input, shape index: {}]
  %s1 = inlined_call_operand.vmem [shape: f32[4,128], index: 1, kind: input, shape index: {}]
  %s2 = inlined_call_operand.vmem [shape: f32[1,128], index: 2, kind: input, shape index: {}]
  %s3 = inlined_call_operand.hbm [shape: f32[2,128,128], index: 3, kind: input, shape index: {}]
  %s4 = inlined_call_operand.vmem [shape: f32[2,1,128], index: 4, kind: input, shape index: {}]
  %s5 = inlined_call_operand.hbm [shape: f32[128,128], index: 5, kind: input, shape index: {}]
  %s6 = inlined_call_operand.vmem [shape: f32[1,128], index: 6, kind: input, shape index: {}]
  %s7 = inlined_call_operand.hbm [shape: f32[16,128], index: 7, kind: output, shape index: {}]
  %s8 = sld [smem:[#allocation0]]
  $region46: #{tpu_custom_call.1} parent=0
    _
  %s10 = ssub.s32 1, %s8
  %s11 = scalar_select 0, %s10, %s8
  $region1: #{tpu_custom_call.1} parent=0
    #allocation2 [shape = 'u8[131072]{0}', space=vmem, size = 0x20000, scoped, tag = 'input window, operand 3, single buffered']
    #allocation3 [shape = 's32[1]{0}', space=sflag, size = 0x4, scoped, tag = 'scoped memory for tpu_custom_call.1']
    #allocation4 [shape = 's32[1]{0}', space=sflag, size = 0x4, scoped, tag = 'scoped memory for tpu_custom_call.1']
    #allocation5 [shape = 'u8[65536]{0}', space=vmem, size = 0x10000, scoped, tag = 'input window, operand 5, single buffered']
    #allocation6 [shape = 's32[1]{0}', space=sflag, size = 0x4, scoped, tag = 'scoped memory for tpu_custom_call.1']
    #allocation7 [shape = 'u8[8192]{0}', space=vmem, size = 0x2000, scoped, tag = 'output window, operand 0, single buffered']
    %12 = vsyncpa [#allocation3], 0
    %13 = vsyncpa [#allocation6], 0
    %14 = vsyncpa [#allocation4], 0
    // Predicated region
    $region2: #{tpu_custom_call.1} parent=1 // pred_check
      _
    $region3: #{tpu_custom_call.1} parent=1 // pred_check_branch
      %16 = sbr.rel (0) target = $region5
    $region4: #{tpu_custom_call.1} parent=1 // pred_region
      _
    $region5: #{tpu_custom_call.1} parent=1 // pred_fallthru
      _
    // Predicated region
    $region6: #{tpu_custom_call.1} parent=1 // pred_check
      _
    $region7: #{tpu_custom_call.1} parent=1 // pred_check_branch
      %18 = sbr.rel (0) target = $region9
    $region8: #{tpu_custom_call.1} parent=1 // pred_region
      _
    $region9: #{tpu_custom_call.1} parent=1 // pred_fallthru
      _
    // Predicated region
    $region10: #{tpu_custom_call.1} parent=1 // pred_check
      _
    $region11: #{tpu_custom_call.1} parent=1 // pred_check_branch
      %20 = sbr.rel (0) target = $region13
    $region12: #{tpu_custom_call.1} parent=1 // pred_region
      _
    $region13: #{tpu_custom_call.1} parent=1 // pred_fallthru
      _
    // Predicated region
    $region14: #{tpu_custom_call.1} parent=1 // pred_check
      _
    $region15: #{tpu_custom_call.1} parent=1 // pred_check_branch
      %22 = sbr.rel (0) target = $region17
    $region16: #{tpu_custom_call.1} parent=1 // pred_region
      %s24 = ssub.s32 4096, 4096
      %25 = vsyncadd [#allocation3], %s24
      %s26 = sshll.u32 [#allocation2], 4
      %s27 = int_to_ptr.vmem [resolvable:$true] %s26
      %32 = dma.hbm_to_vmem [thread:$0]  %s3, 4096, %s27, [#allocation3], 128, 128, 8
    $region17: #{tpu_custom_call.1} parent=1 // pred_fallthru
      _
    // Predicated region
    $region18: #{tpu_custom_call.1} parent=1 // pred_check
      _
    $region19: #{tpu_custom_call.1} parent=1 // pred_check_branch
      %34 = sbr.rel (0) target = $region21
    $region20: #{tpu_custom_call.1} parent=1 // pred_region
      _
    $region21: #{tpu_custom_call.1} parent=1 // pred_fallthru
      _
    // Predicated region
    $region22: #{tpu_custom_call.1} parent=1 // pred_check
      _
    $region23: #{tpu_custom_call.1} parent=1 // pred_check_branch
      %36 = sbr.rel (0) target = $region25
    $region24: #{tpu_custom_call.1} parent=1 // pred_region
      %s38 = ssub.s32 2048, 2048
      %39 = vsyncadd [#allocation6], %s38
      %s40 = sshll.u32 [#allocation5], 4
      %s41 = int_to_ptr.vmem [resolvable:$true] %s40
      %46 = dma.hbm_to_vmem [thread:$0]  %s5, 2048, %s41, [#allocation6], 128, 128, 8
    $region25: #{tpu_custom_call.1} parent=1 // pred_fallthru
      _
    // Predicated region
    $region26: #{tpu_custom_call.1} parent=1 // pred_check
      _
    $region27: #{tpu_custom_call.1} parent=1 // pred_check_branch
      %48 = sbr.rel (0) target = $region29
    $region28: #{tpu_custom_call.1} parent=1 // pred_region
      _
    $region29: #{tpu_custom_call.1} parent=1 // pred_fallthru
      _
    // Predicated region
    $region30: #{tpu_custom_call.1} parent=1 // pred_check
      _
    $region31: #{tpu_custom_call.1} parent=1 // pred_check_branch
      %50 = sbr.rel (0) target = $region33
    $region32: #{tpu_custom_call.1} parent=1 // pred_region
      %51 = dma.done [#allocation3], 4096
    $region33: #{tpu_custom_call.1} parent=1 // pred_fallthru
      _
    // Predicated region
    $region34: #{tpu_custom_call.1} parent=1 // pred_check
      _
    $region35: #{tpu_custom_call.1} parent=1 // pred_check_branch
      %53 = sbr.rel (0) target = $region37
    $region36: #{tpu_custom_call.1} parent=1 // pred_region
      %54 = dma.done [#allocation6], 2048
    $region37: #{tpu_custom_call.1} parent=1 // pred_fallthru
      _
    %v55 = vld [vmem:[%s0] sm:$0xff]
    %v56 = vld [vmem:[%s0 + $0x8] sm:$0xff]
    %v57 = vld [vmem:[%s1] sm:$0xf]
    %v58 = vld [vmem:[%s2] sm:$0x1]
    %v60 = vlaneseq
    %v61 = vshrl.u32 %v60, 7
    %v62 = vsub.s32 0, %v61
    %v63 = vrot.slane %v58, %v62
    %vm65 = vcmask 31744
    %v67 = vsel %vm65, %v55, 0
    %v70 = vsel %vm65, %v56, 0
    %vm72 = vcmask 1043456
    %v74 = vsel %vm72, %v57, 0
    %76 = vmatprep.subr.mxu0 0.0
    %77 = vmatpush1.msra.mxu0 0.0
    %78 = vmatprep.subr.mxu0 0.0
    %79 = vmatpush1.msra.mxu0 0.0
    %80 = vmatprep.subr.mxu0 0.0
    %81 = vmatpush1.msra.mxu0 0.0
    %82 = vmatprep.subr.mxu0 0.0
    %83 = vmatpush1.msra.mxu0 0.0
    %84 = vmatprep.subr.mxu0 0.0
    %85 = vmatpush1.msra.mxu0 0.0
    %86 = vmatprep.subr.mxu0 0.0
    %87 = vmatpush1.msra.mxu0 0.0
    %88 = vmatprep.subr.mxu0 0.0
    %89 = vmatpush1.msra.mxu0 0.0
    %90 = vmatprep.subr.mxu0 0.0
    %91 = vmatpush1.msra.mxu0 0.0
    %92 = vmatprep.subr.mxu0 0.0
    %93 = vmatpush1.msra.mxu0 0.0
    %94 = vmatprep.subr.mxu0 0.0
    %95 = vmatpush1.msra.mxu0 0.0
    %96 = vmatprep.subr.mxu0 0.0
    %97 = vmatpush1.msra.mxu0 0.0
    %98 = vmatprep.subr.mxu0 0.0
    %99 = vmatpush1.msra.mxu0 0.0
    %100 = vmatprep.subr.mxu0 0.0
    %101 = vmatpush1.msra.mxu0 0.0
    %102 = vmatprep.subr.mxu0 0.0
    %103 = vmatpush1.msra.mxu0 0.0
    %104 = vmatprep.subr.mxu0 0.0
    %105 = vmatpush1.msra.mxu0 0.0
    %106 = vmatprep.subr.mxu0 0.0
    %107 = vmatpush1.msra.mxu0 %v74
    %108 = vmatprep.subr.mxu0 0.0
    %109 = vmatpush2.msra.mxu0 0.0
    %110 = vmatprep.subr.mxu0 0.0
    %111 = vmatpush2.msra.mxu0 0.0
    %112 = vmatprep.subr.mxu0 0.0
    %113 = vmatpush2.msra.mxu0 0.0
    %114 = vmatprep.subr.mxu0 0.0
    %115 = vmatpush2.msra.mxu0 0.0
    %116 = vmatprep.subr.mxu0 0.0
    %117 = vmatpush2.msra.mxu0 0.0
    %118 = vmatprep.subr.mxu0 0.0
    %119 = vmatpush2.msra.mxu0 0.0
    %120 = vmatprep.subr.mxu0 0.0
    %121 = vmatpush2.msra.mxu0 0.0
    %122 = vmatprep.subr.mxu0 0.0
    %123 = vmatpush2.msra.mxu0 0.0
    %124 = vmatprep.subr.mxu0 0.0
    %125 = vmatpush2.msra.mxu0 0.0
    %126 = vmatprep.subr.mxu0 0.0
    %127 = vmatpush2.msra.mxu0 0.0
    %128 = vmatprep.subr.mxu0 0.0
    %129 = vmatpush2.msra.mxu0 0.0
    %130 = vmatprep.subr.mxu0 0.0
    %131 = vmatpush2.msra.mxu0 0.0
    %132 = vmatprep.subr.mxu0 0.0
    %133 = vmatpush2.msra.mxu0 0.0
    %134 = vmatprep.subr.mxu0 0.0
    %135 = vmatpush2.msra.mxu0 0.0
    %136 = vmatprep.subr.mxu0 0.0
    %137 = vmatpush2.msra.mxu0 0.0
    %138 = vmatprep.subr.mxu0 0.0
    %139 = vmatpush2.msra.mxu0 0.0
    %140 = vmatprep.mubr.f32.mxu0 0.0
    %141 = vmatmul.mubr.f32.gmra.mxu0 %v67
    %v142 = vpop.f32.mrf.mxu0
    %v143 = vadd.f32 %v63, %v142
    %v144 = vpop.f32.mrf.mxu0
    %145 = vmatprep.mubr.f32.mxu0 0.0
    %146 = vmatmul.mubr.f32.gmra.mxu0 %v70
    %v147 = vpop.f32.mrf.mxu0
    %v148 = vadd.f32 %v63, %v147
    %v149 = vpop.f32.mrf.mxu0
    %150 = vdwg.mxu0
    %v151 = vtanh.pop %v143
    %v152 = vtanh.pop %v148
    %v153 = vld [vmem:[#allocation2] sm:$0xff]
    %v154 = vld [vmem:[#allocation2 + $0x8] sm:$0xff]
    %v155 = vld [vmem:[#allocation2 + $0x10] sm:$0xff]
    %v156 = vld [vmem:[#allocation2 + $0x18] sm:$0xff]
    %v157 = vld [vmem:[#allocation2 + $0x20] sm:$0xff]
    %v158 = vld [vmem:[#allocation2 + $0x28] sm:$0xff]
    %v159 = vld [vmem:[#allocation2 + $0x30] sm:$0xff]
    %v160 = vld [vmem:[#allocation2 + $0x38] sm:$0xff]
    %v161 = vld [vmem:[#allocation2 + $0x40] sm:$0xff]
    %v162 = vld [vmem:[#allocation2 + $0x48] sm:$0xff]
    %v163 = vld [vmem:[#allocation2 + $0x50] sm:$0xff]
    %v164 = vld [vmem:[#allocation2 + $0x58] sm:$0xff]
    %v165 = vld [vmem:[#allocation2 + $0x60] sm:$0xff]
    %v166 = vld [vmem:[#allocation2 + $0x68] sm:$0xff]
    %v167 = vld [vmem:[#allocation2 + $0x70] sm:$0xff]
    %v168 = vld [vmem:[#allocation2 + $0x78] sm:$0xff]
    %v169 = vld [vmem:[%s4] sm:$0x1]
    %v171 = vlaneseq
    %v172 = vshrl.u32 %v171, 7
    %v173 = vsub.s32 0, %v172
    %v174 = vrot.slane %v169, %v173
    %176 = vmatprep.subr.mxu0 0.0
    %177 = vmatpush1.msra.mxu0 %v168
    %178 = vmatprep.subr.mxu0 0.0
    %179 = vmatpush1.msra.mxu0 %v167
    %180 = vmatprep.subr.mxu0 0.0
    %181 = vmatpush1.msra.mxu0 %v166
    %182 = vmatprep.subr.mxu0 0.0
    %183 = vmatpush1.msra.mxu0 %v165
    %184 = vmatprep.subr.mxu0 0.0
    %185 = vmatpush1.msra.mxu0 %v164
    %186 = vmatprep.subr.mxu0 0.0
    %187 = vmatpush1.msra.mxu0 %v163
    %188 = vmatprep.subr.mxu0 0.0
    %189 = vmatpush1.msra.mxu0 %v162
    %190 = vmatprep.subr.mxu0 0.0
    %191 = vmatpush1.msra.mxu0 %v161
    %192 = vmatprep.subr.mxu0 0.0
    %193 = vmatpush1.msra.mxu0 %v160
    %194 = vmatprep.subr.mxu0 0.0
    %195 = vmatpush1.msra.mxu0 %v159
    %196 = vmatprep.subr.mxu0 0.0
    %197 = vmatpush1.msra.mxu0 %v158
    %198 = vmatprep.subr.mxu0 0.0
    %199 = vmatpush1.msra.mxu0 %v157
    %200 = vmatprep.subr.mxu0 0.0
    %201 = vmatpush1.msra.mxu0 %v156
    %202 = vmatprep.subr.mxu0 0.0
    %203 = vmatpush1.msra.mxu0 %v155
    %204 = vmatprep.subr.mxu0 0.0
    %205 = vmatpush1.msra.mxu0 %v154
    %206 = vmatprep.subr.mxu0 0.0
    %207 = vmatpush1.msra.mxu0 %v153
    %208 = vmatprep.subr.mxu0 0.0
    %209 = vmatpush2.msra.mxu0 0.0
    %210 = vmatprep.subr.mxu0 0.0
    %211 = vmatpush2.msra.mxu0 0.0
    %212 = vmatprep.subr.mxu0 0.0
    %213 = vmatpush2.msra.mxu0 0.0
    %214 = vmatprep.subr.mxu0 0.0
    %215 = vmatpush2.msra.mxu0 0.0
    %216 = vmatprep.subr.mxu0 0.0
    %217 = vmatpush2.msra.mxu0 0.0
    %218 = vmatprep.subr.mxu0 0.0
    %219 = vmatpush2.msra.mxu0 0.0
    %220 = vmatprep.subr.mxu0 0.0
    %221 = vmatpush2.msra.mxu0 0.0
    %222 = vmatprep.subr.mxu0 0.0
    %223 = vmatpush2.msra.mxu0 0.0
    %224 = vmatprep.subr.mxu0 0.0
    %225 = vmatpush2.msra.mxu0 0.0
    %226 = vmatprep.subr.mxu0 0.0
    %227 = vmatpush2.msra.mxu0 0.0
    %228 = vmatprep.subr.mxu0 0.0
    %229 = vmatpush2.msra.mxu0 0.0
    %230 = vmatprep.subr.mxu0 0.0
    %231 = vmatpush2.msra.mxu0 0.0
    %232 = vmatprep.subr.mxu0 0.0
    %233 = vmatpush2.msra.mxu0 0.0
    %234 = vmatprep.subr.mxu0 0.0
    %235 = vmatpush2.msra.mxu0 0.0
    %236 = vmatprep.subr.mxu0 0.0
    %237 = vmatpush2.msra.mxu0 0.0
    %238 = vmatprep.subr.mxu0 0.0
    %239 = vmatpush2.msra.mxu0 0.0
    %240 = vmatprep.mubr.f32.mxu0 0.0
    %241 = vmatmul.mubr.f32.gmra.mxu0 %v151
    %v242 = vpop.f32.mrf.mxu0
    %v243 = vadd.f32 %v174, %v242
    %v244 = vpop.f32.mrf.mxu0
    %245 = vmatprep.mubr.f32.mxu0 0.0
    %246 = vmatmul.mubr.f32.gmra.mxu0 %v152
    %v247 = vpop.f32.mrf.mxu0
    %v248 = vadd.f32 %v174, %v247
    %v249 = vpop.f32.mrf.mxu0
    %250 = vdwg.mxu0
    %v251 = vtanh.pop %v243
    %v252 = vtanh.pop %v248
    %s253 = scalar_lea.vmem [#allocation2], 128
    %v254 = vld [vmem:[%s253] sm:$0xff]
    %v255 = vld [vmem:[%s253 + $0x8] sm:$0xff]
    %v256 = vld [vmem:[%s253 + $0x10] sm:$0xff]
    %v257 = vld [vmem:[%s253 + $0x18] sm:$0xff]
    %v258 = vld [vmem:[%s253 + $0x20] sm:$0xff]
    %v259 = vld [vmem:[%s253 + $0x28] sm:$0xff]
    %v260 = vld [vmem:[%s253 + $0x30] sm:$0xff]
    %v261 = vld [vmem:[%s253 + $0x38] sm:$0xff]
    %v262 = vld [vmem:[%s253 + $0x40] sm:$0xff]
    %v263 = vld [vmem:[%s253 + $0x48] sm:$0xff]
    %v264 = vld [vmem:[%s253 + $0x50] sm:$0xff]
    %v265 = vld [vmem:[%s253 + $0x58] sm:$0xff]
    %v266 = vld [vmem:[%s253 + $0x60] sm:$0xff]
    %v267 = vld [vmem:[%s253 + $0x68] sm:$0xff]
    %v268 = vld [vmem:[%s253 + $0x70] sm:$0xff]
    %v269 = vld [vmem:[%s253 + $0x78] sm:$0xff]
    %s270 = scalar_lea.vmem %s4, 1
    %v271 = vld [vmem:[%s270] sm:$0x1]
    %v273 = vlaneseq
    %v274 = vshrl.u32 %v273, 7
    %v275 = vsub.s32 0, %v274
    %v276 = vrot.slane %v271, %v275
    %278 = vmatprep.subr.mxu0 0.0
    %279 = vmatpush1.msra.mxu0 %v269
    %280 = vmatprep.subr.mxu0 0.0
    %281 = vmatpush1.msra.mxu0 %v268
    %282 = vmatprep.subr.mxu0 0.0
    %283 = vmatpush1.msra.mxu0 %v267
    %284 = vmatprep.subr.mxu0 0.0
    %285 = vmatpush1.msra.mxu0 %v266
    %286 = vmatprep.subr.mxu0 0.0
    %287 = vmatpush1.msra.mxu0 %v265
    %288 = vmatprep.subr.mxu0 0.0
    %289 = vmatpush1.msra.mxu0 %v264
    %290 = vmatprep.subr.mxu0 0.0
    %291 = vmatpush1.msra.mxu0 %v263
    %292 = vmatprep.subr.mxu0 0.0
    %293 = vmatpush1.msra.mxu0 %v262
    %294 = vmatprep.subr.mxu0 0.0
    %295 = vmatpush1.msra.mxu0 %v261
    %296 = vmatprep.subr.mxu0 0.0
    %297 = vmatpush1.msra.mxu0 %v260
    %298 = vmatprep.subr.mxu0 0.0
    %299 = vmatpush1.msra.mxu0 %v259
    %300 = vmatprep.subr.mxu0 0.0
    %301 = vmatpush1.msra.mxu0 %v258
    %302 = vmatprep.subr.mxu0 0.0
    %303 = vmatpush1.msra.mxu0 %v257
    %304 = vmatprep.subr.mxu0 0.0
    %305 = vmatpush1.msra.mxu0 %v256
    %306 = vmatprep.subr.mxu0 0.0
    %307 = vmatpush1.msra.mxu0 %v255
    %308 = vmatprep.subr.mxu0 0.0
    %309 = vmatpush1.msra.mxu0 %v254
    %310 = vmatprep.subr.mxu0 0.0
    %311 = vmatpush2.msra.mxu0 0.0
    %312 = vmatprep.subr.mxu0 0.0
    %313 = vmatpush2.msra.mxu0 0.0
    %314 = vmatprep.subr.mxu0 0.0
    %315 = vmatpush2.msra.mxu0 0.0
    %316 = vmatprep.subr.mxu0 0.0
    %317 = vmatpush2.msra.mxu0 0.0
    %318 = vmatprep.subr.mxu0 0.0
    %319 = vmatpush2.msra.mxu0 0.0
    %320 = vmatprep.subr.mxu0 0.0
    %321 = vmatpush2.msra.mxu0 0.0
    %322 = vmatprep.subr.mxu0 0.0
    %323 = vmatpush2.msra.mxu0 0.0
    %324 = vmatprep.subr.mxu0 0.0
    %325 = vmatpush2.msra.mxu0 0.0
    %326 = vmatprep.subr.mxu0 0.0
    %327 = vmatpush2.msra.mxu0 0.0
    %328 = vmatprep.subr.mxu0 0.0
    %329 = vmatpush2.msra.mxu0 0.0
    %330 = vmatprep.subr.mxu0 0.0
    %331 = vmatpush2.msra.mxu0 0.0
    %332 = vmatprep.subr.mxu0 0.0
    %333 = vmatpush2.msra.mxu0 0.0
    %334 = vmatprep.subr.mxu0 0.0
    %335 = vmatpush2.msra.mxu0 0.0
    %336 = vmatprep.subr.mxu0 0.0
    %337 = vmatpush2.msra.mxu0 0.0
    %338 = vmatprep.subr.mxu0 0.0
    %339 = vmatpush2.msra.mxu0 0.0
    %340 = vmatprep.subr.mxu0 0.0
    %341 = vmatpush2.msra.mxu0 0.0
    %342 = vmatprep.mubr.f32.mxu0 0.0
    %343 = vmatmul.mubr.f32.gmra.mxu0 %v251
    %v344 = vpop.f32.mrf.mxu0
    %v345 = vadd.f32 %v276, %v344
    %v346 = vpop.f32.mrf.mxu0
    %347 = vmatprep.mubr.f32.mxu0 0.0
    %348 = vmatmul.mubr.f32.gmra.mxu0 %v252
    %v349 = vpop.f32.mrf.mxu0
    %v350 = vadd.f32 %v276, %v349
    %v351 = vpop.f32.mrf.mxu0
    %352 = vdwg.mxu0
    %v353 = vtanh.pop %v345
    %v354 = vtanh.pop %v350
    %v355 = vld [vmem:[#allocation5] sm:$0xff]
    %v356 = vld [vmem:[#allocation5 + $0x8] sm:$0xff]
    %v357 = vld [vmem:[#allocation5 + $0x10] sm:$0xff]
    %v358 = vld [vmem:[#allocation5 + $0x18] sm:$0xff]
    %v359 = vld [vmem:[#allocation5 + $0x20] sm:$0xff]
    %v360 = vld [vmem:[#allocation5 + $0x28] sm:$0xff]
    %v361 = vld [vmem:[#allocation5 + $0x30] sm:$0xff]
    %v362 = vld [vmem:[#allocation5 + $0x38] sm:$0xff]
    %v363 = vld [vmem:[#allocation5 + $0x40] sm:$0xff]
    %v364 = vld [vmem:[#allocation5 + $0x48] sm:$0xff]
    %v365 = vld [vmem:[#allocation5 + $0x50] sm:$0xff]
    %v366 = vld [vmem:[#allocation5 + $0x58] sm:$0xff]
    %v367 = vld [vmem:[#allocation5 + $0x60] sm:$0xff]
    %v368 = vld [vmem:[#allocation5 + $0x68] sm:$0xff]
    %v369 = vld [vmem:[#allocation5 + $0x70] sm:$0xff]
    %v370 = vld [vmem:[#allocation5 + $0x78] sm:$0xff]
    %v371 = vld [vmem:[%s6] sm:$0x1]
    %v373 = vlaneseq
    %v374 = vshrl.u32 %v373, 7
    %v375 = vsub.s32 0, %v374
    %v376 = vrot.slane %v371, %v375
    %378 = vmatprep.subr.mxu0 0.0
    %379 = vmatpush1.msra.mxu0 %v370
    %380 = vmatprep.subr.mxu0 0.0
    %381 = vmatpush1.msra.mxu0 %v369
    %382 = vmatprep.subr.mxu0 0.0
    %383 = vmatpush1.msra.mxu0 %v368
    %384 = vmatprep.subr.mxu0 0.0
    %385 = vmatpush1.msra.mxu0 %v367
    %386 = vmatprep.subr.mxu0 0.0
    %387 = vmatpush1.msra.mxu0 %v366
    %388 = vmatprep.subr.mxu0 0.0
    %389 = vmatpush1.msra.mxu0 %v365
    %390 = vmatprep.subr.mxu0 0.0
    %391 = vmatpush1.msra.mxu0 %v364
    %392 = vmatprep.subr.mxu0 0.0
    %393 = vmatpush1.msra.mxu0 %v363
    %394 = vmatprep.subr.mxu0 0.0
    %395 = vmatpush1.msra.mxu0 %v362
    %396 = vmatprep.subr.mxu0 0.0
    %397 = vmatpush1.msra.mxu0 %v361
    %398 = vmatprep.subr.mxu0 0.0
    %399 = vmatpush1.msra.mxu0 %v360
    %400 = vmatprep.subr.mxu0 0.0
    %401 = vmatpush1.msra.mxu0 %v359
    %402 = vmatprep.subr.mxu0 0.0
    %403 = vmatpush1.msra.mxu0 %v358
    %404 = vmatprep.subr.mxu0 0.0
    %405 = vmatpush1.msra.mxu0 %v357
    %406 = vmatprep.subr.mxu0 0.0
    %407 = vmatpush1.msra.mxu0 %v356
    %408 = vmatprep.subr.mxu0 0.0
    %409 = vmatpush1.msra.mxu0 %v355
    %410 = vmatprep.subr.mxu0 0.0
    %411 = vmatpush2.msra.mxu0 0.0
    %412 = vmatprep.subr.mxu0 0.0
    %413 = vmatpush2.msra.mxu0 0.0
    %414 = vmatprep.subr.mxu0 0.0
    %415 = vmatpush2.msra.mxu0 0.0
    %416 = vmatprep.subr.mxu0 0.0
    %417 = vmatpush2.msra.mxu0 0.0
    %418 = vmatprep.subr.mxu0 0.0
    %419 = vmatpush2.msra.mxu0 0.0
    %420 = vmatprep.subr.mxu0 0.0
    %421 = vmatpush2.msra.mxu0 0.0
    %422 = vmatprep.subr.mxu0 0.0
    %423 = vmatpush2.msra.mxu0 0.0
    %424 = vmatprep.subr.mxu0 0.0
    %425 = vmatpush2.msra.mxu0 0.0
    %426 = vmatprep.subr.mxu0 0.0
    %427 = vmatpush2.msra.mxu0 0.0
    %428 = vmatprep.subr.mxu0 0.0
    %429 = vmatpush2.msra.mxu0 0.0
    %430 = vmatprep.subr.mxu0 0.0
    %431 = vmatpush2.msra.mxu0 0.0
    %432 = vmatprep.subr.mxu0 0.0
    %433 = vmatpush2.msra.mxu0 0.0
    %434 = vmatprep.subr.mxu0 0.0
    %435 = vmatpush2.msra.mxu0 0.0
    %436 = vmatprep.subr.mxu0 0.0
    %437 = vmatpush2.msra.mxu0 0.0
    %438 = vmatprep.subr.mxu0 0.0
    %439 = vmatpush2.msra.mxu0 0.0
    %440 = vmatprep.subr.mxu0 0.0
    %441 = vmatpush2.msra.mxu0 0.0
    %442 = vmatprep.mubr.f32.mxu0 0.0
    %443 = vmatmul.mubr.f32.gmra.mxu0 %v353
    %v444 = vpop.f32.mrf.mxu0
    %v445 = vadd.f32 %v376, %v444
    %v446 = vpop.f32.mrf.mxu0
    %447 = vmatprep.mubr.f32.mxu0 0.0
    %448 = vmatmul.mubr.f32.gmra.mxu0 %v354
    %v449 = vpop.f32.mrf.mxu0
    %v450 = vadd.f32 %v376, %v449
    %v451 = vpop.f32.mrf.mxu0
    %452 = vdwg.mxu0
    %v453 = vmax.f32 %v445, 0.0
    %v454 = vmax.f32 %v450, 0.0
    %v455 = vand.u32 2147483647, %v445
    %v456 = vand.u32 2147483647, %v450
    %v457 = vsub.f32 0.0, %v455
    %v458 = vsub.f32 0.0, %v456
    %v459 = vmul.f32 %v457, 1.442695
    %v460 = vpow.pop %v459
    %v461 = vmul.f32 %v458, 1.442695
    %v462 = vpow.pop %v461
    %v463 = vadd.f32 %v460, 1.0
    %v464 = vlog2.pop %v463
    %v465 = vmul.f32 %v464, 0.6931472
    %v466 = vmul.f32 -0.5, %v460
    %v467 = vadd.f32 %v466, 1.0
    %v468 = vmul.f32 %v467, %v460
    %v469 = vand.u32 2147483647, %v460
    %vm470 = vcmp.lt.f32.partialorder %v469, 0.0004427343
    %v471 = vsel %vm470, %v468, %v465
    %v472 = vadd.f32 %v462, 1.0
    %v473 = vlog2.pop %v472
    %v474 = vmul.f32 %v473, 0.6931472
    %v475 = vmul.f32 -0.5, %v462
    %v476 = vadd.f32 %v475, 1.0
    %v477 = vmul.f32 %v476, %v462
    %v478 = vand.u32 2147483647, %v462
    %vm479 = vcmp.lt.f32.partialorder %v478, 0.0004427343
    %v480 = vsel %vm479, %v477, %v474
    %v481 = vadd.f32 %v453, %v471
    %v482 = vadd.f32 %v454, %v480
    %483 = vst [vmem:[#allocation7] sm:$0xff] %v481
    %484 = vst [vmem:[#allocation7 + $0x8] sm:$0xff] %v482
    // Predicated region
    $region38: #{tpu_custom_call.1} parent=1 // pred_check
      _
    $region39: #{tpu_custom_call.1} parent=1 // pred_check_branch
      %486 = sbr.rel (0) target = $region41
    $region40: #{tpu_custom_call.1} parent=1 // pred_region
      %s488 = ssub.s32 256, 256
      %489 = vsyncadd [#allocation4], %s488
      %s490 = sshll.u32 [#allocation7], 4
      %s491 = int_to_ptr.vmem [resolvable:$true] %s490
      %496 = dma.vmem_to_hbm [thread:$0]  %s491, 256, %s7, [#allocation4], 128, 128, 8
    $region41: #{tpu_custom_call.1} parent=1 // pred_fallthru
      _
    // Predicated region
    $region42: #{tpu_custom_call.1} parent=1 // pred_check
      _
    $region43: #{tpu_custom_call.1} parent=1 // pred_check_branch
      %498 = sbr.rel (0) target = $region45
    $region44: #{tpu_custom_call.1} parent=1 // pred_region
      %499 = dma.done [#allocation4], 256
    $region45: #{tpu_custom_call.1} parent=1 // pred_fallthru
      _
    %500 = vsyncpa [#allocation3], 1
    %501 = vsyncpa [#allocation6], 1
    %502 = vsyncpa [#allocation4], 1

</llo_original>
